<compile_context>
chip_gen: v7x
topology: tpu7x:2x2x1
jax: 0.10.0
libtpu: 0.0.40
codegen_flags: <defaults>
</compile_context>

<pallas_src>
import functools

import jax
import jax.numpy as jnp
from jax import lax
from jax.experimental import pallas as pl
from jax.experimental.pallas import tpu as pltpu


def _entropy_loss_kernel(rule_ref, rule_m_ref,
                         tok_ref, tok_m_ref,
                         ref_ref, ref_m_ref,
                         out_ref, ent_acc, cnt_acc, *,
                         batch: int, total_rows: int, tile_rows: int,
                         n_lanes: int, needs_valid: bool,
                         reduction: str, inv_batch: float):
    i = pl.program_id(0)

    @pl.when(i == 0)
    def _init():
        ent_acc[...] = jnp.zeros_like(ent_acc)
        cnt_acc[...] = jnp.zeros_like(cnt_acc)

    # Row / lane index planes for this block (rows are packed as l*B + b).
    local_row = lax.broadcasted_iota(jnp.int32, (tile_rows, 1), 0)
    global_row = i * tile_rows + local_row                        # (TR, 1)
    lane_id = lax.broadcasted_iota(jnp.int32, (tile_rows, n_lanes), 1)
    batch_id = global_row % batch                                 # (TR, 1)
    onehot = jnp.where(batch_id == lane_id, 1.0, 0.0)             # (TR, NL) f32
    valid = (global_row < total_rows) if needs_valid else None    # partial block

    def per_row(data_ref, mask_ref):
        data = data_ref[...].astype(jnp.float32)                  # (TR, C)
        mask = mask_ref[...]                                      # (TR, 1)
        if mask.dtype != jnp.bool_:
            mask = mask != 0
        if valid is not None:
            # Kill garbage rows of a padded edge block (zero data & mask so the
            # contribution is exactly 0, never NaN).
            data = jnp.where(valid, data, 0.0)
            mask = jnp.logical_and(mask, valid)
        # Reference quirk: only the log() argument is masked; the -(p*log)
        # product uses the UNmasked data and every timestep is summed.
        masked = jnp.where(mask, data, 0.0)
        ent = -(data * jnp.log(masked + 1e-07))                   # (TR, C)
        ent_row = jnp.sum(ent, axis=1, keepdims=True)             # (TR, 1) lane reduce
        cnt_row = mask.astype(jnp.float32)                        # (TR, 1)
        return ent_row, cnt_row

    e1, c1 = per_row(rule_ref, rule_m_ref)
    e2, c2 = per_row(tok_ref, tok_m_ref)
    e3, c3 = per_row(ref_ref, ref_m_ref)
    ent_row = e1 + e2 + e3                                        # (TR, 1)
    cnt_row = c1 + c2 + c3                                        # (TR, 1)

    # Scatter each row to its batch lane, then a single sublane reduce each.
    ent_acc[...] += jnp.sum(ent_row * onehot, axis=0, keepdims=True)   # (1, NL)
    cnt_acc[...] += jnp.sum(cnt_row * onehot, axis=0, keepdims=True)   # (1, NL)

    @pl.when(i == pl.num_programs(0) - 1)
    def _finalize():
        lane = lax.broadcasted_iota(jnp.int32, (1, n_lanes), 1)
        # Padding lanes (>= B) would be 0/0; give them a denominator of 1 so the
        # cross-lane sum for mean/sum is unaffected.  Real all-zero-mask batch
        # elements still produce inf/NaN exactly like the reference.
        pad_guard = jnp.where(lane >= batch, 1.0, 0.0)
        per_batch = ent_acc[...] / (cnt_acc[...] + pad_guard)     # (1, NL)
        if reduction == "none":
            out_ref[...] = per_batch                              # lane-dense store
        else:
            total = jnp.sum(per_batch, axis=1, keepdims=True)     # (1, 1)
            if reduction == "mean":
                total = total * inv_batch
            out_ref[...] = jnp.broadcast_to(total, out_ref.shape)


@functools.partial(jax.jit, static_argnames=("reduction",))
def entropy_loss(rule_data, rule_mask,
                 token_data, token_mask,
                 reference_data, reference_mask,
                 reduction: str = "mean"):
    assert reduction in ("mean", "sum", "none")
    L, B, C1 = rule_data.shape
    C2 = token_data.shape[-1]
    C3 = reference_data.shape[-1]
    LB = L * B
    n_lanes = ((B + 127) // 128) * 128

    # Row-tile for the grid: single block for small problems, 1024-row tiles
    # (double-buffered pipeline, bounded VMEM) for large ones.
    max_tile_rows = 1024
    tr = LB if LB <= max_tile_rows else max_tile_rows
    grid = (pl.cdiv(LB, tr),)
    needs_valid = (LB % tr) != 0

    # Free layout plumbing: dense 2-D (L*B, C) data and (L*B, 1) bool masks.
    r2 = rule_data.reshape(LB, C1)
    t2 = token_data.reshape(LB, C2)
    f2 = reference_data.reshape(LB, C3)
    rm2 = rule_mask.reshape(LB, 1)
    tm2 = token_mask.reshape(LB, 1)
    fm2 = reference_mask.reshape(LB, 1)

    kernel = functools.partial(
        _entropy_loss_kernel,
        batch=B, total_rows=LB, tile_rows=tr, n_lanes=n_lanes,
        needs_valid=needs_valid, reduction=reduction, inv_batch=1.0 / B)

    def data_spec(c):
        return pl.BlockSpec((tr, c), lambda i: (i, 0))

    mask_spec = pl.BlockSpec((tr, 1), lambda i: (i, 0))

    elems = LB * (C1 + C2 + C3)
    bytes_in = sum(int(x.size) * x.dtype.itemsize
                   for x in (r2, t2, f2, rm2, tm2, fm2))
    cost = pl.CostEstimate(flops=6 * elems,
                           transcendentals=elems,
                           bytes_accessed=bytes_in + 4 * n_lanes)

    out = pl.pallas_call(
        kernel,
        out_shape=jax.ShapeDtypeStruct((1, n_lanes), jnp.float32),
        grid_spec=pltpu.PrefetchScalarGridSpec(
            num_scalar_prefetch=0,
            grid=grid,
            in_specs=[data_spec(C1), mask_spec,
                      data_spec(C2), mask_spec,
                      data_spec(C3), mask_spec],
            out_specs=pl.BlockSpec((1, n_lanes), lambda i: (0, 0)),
            scratch_shapes=[pltpu.VMEM((1, n_lanes), jnp.float32),
                            pltpu.VMEM((1, n_lanes), jnp.float32)]),
        compiler_params=pltpu.CompilerParams(
            dimension_semantics=("arbitrary",),
            vmem_limit_bytes=32 * 1024 * 1024),
        cost_estimate=cost,
    )(r2, rm2, t2, tm2, f2, fm2)

    if reduction == "none":
        return out[0, :B]          # (B,)
    return out[0, 0]               # scalar, already reduced in-kernel


def _reference_entropy_loss(rule_data, rule_mask, token_data, token_mask,
                            reference_data, reference_mask, reduction="mean"):
    """Pure-JAX transcription of the PyTorch forward (for verification)."""
    def entropy(data, mask):
        log_p = jnp.log(jnp.where(mask[:, :, None], data, 0.0) + 1e-07)
        out = -(data * log_p)
        out = out.sum(axis=2)
        # result of the second where(...) in the original code is discarded
        return out.sum(axis=0), mask.astype(jnp.int32).sum(axis=0)

    r, n1 = entropy(rule_data, rule_mask)
    t, n2 = entropy(token_data, token_mask)
    f, n3 = entropy(reference_data, reference_mask)
    out = (r + t + f) / (n1 + n2 + n3)
    if reduction == "mean":
        return jnp.mean(out)
    elif reduction == "sum":
        return jnp.sum(out)
    return out


if __name__ == "__main__":
    def run_case(key, L, B, num_rules, num_tokens, ref_len, lengths, atol):
        k1, k2, k3 = jax.random.split(key, 3)
        rule = jax.nn.softmax(jax.random.normal(k1, (L, B, num_rules)), axis=-1)
        tok = jax.nn.softmax(jax.random.normal(k2, (L, B, num_tokens)), axis=-1)
        ref = jax.nn.softmax(jax.random.normal(k3, (L, B, ref_len)), axis=-1)
        lengths = jnp.asarray(lengths, dtype=jnp.int32)
        mask = jnp.arange(L)[:, None] < lengths[None, :]      # (L, B) bool
        for red in ("mean", "sum", "none"):
            got = jax.block_until_ready(
                entropy_loss(rule, mask, tok, mask, ref, mask, reduction=red))
            want = _reference_entropy_loss(rule, mask, tok, mask, ref, mask,
                                           reduction=red)
            assert jnp.allclose(got, want, rtol=1e-5, atol=atol), (red, got, want)

    # Small case matching the module's toy shapes (single grid step).
    run_case(jax.random.PRNGKey(0), L=8, B=2,
             num_rules=32, num_tokens=48, ref_len=16,
             lengths=[8, 5], atol=1e-5)
    # Larger case exercising the row-grid + partial-edge-block masking path.
    run_case(jax.random.PRNGKey(1), L=300, B=4,
             num_rules=32, num_tokens=48, ref_len=16,
             lengths=[300, 171, 256, 64], atol=1e-4)

    print("KERNEL_OK")
</pallas_src>

<mosaic_0001>
module attributes {stable_mosaic.version = 11 : i64} {
  func.func @_entropy_loss_kernel(%arg0: i32, %arg1: memref<16x32xf32, #tpu.memory_space<vmem>>, %arg2: memref<16x1xi32, #tpu.memory_space<vmem>>, %arg3: memref<16x48xf32, #tpu.memory_space<vmem>>, %arg4: memref<16x1xi32, #tpu.memory_space<vmem>>, %arg5: memref<16x16xf32, #tpu.memory_space<vmem>>, %arg6: memref<16x1xi32, #tpu.memory_space<vmem>>, %arg7: memref<1x128xf32, #tpu.memory_space<vmem>>, %arg8: memref<1x128xf32, #tpu.memory_space<vmem>>, %arg9: memref<1x128xf32, #tpu.memory_space<vmem>>) attributes {dimension_semantics = [#tpu.dimension_semantics<arbitrary>], iteration_bounds = array<i64: 1>, scalar_prefetch = 0 : i64, scratch_operands = 2 : i64, tpu.core_type = #tpu.core_type<tc>, window_params = [{transform_indices = @transform_0, window_bounds = array<i64: 16, 32>}, {transform_indices = @transform_1, window_bounds = array<i64: 16, 1>}, {transform_indices = @transform_2, window_bounds = array<i64: 16, 48>}, {transform_indices = @transform_3, window_bounds = array<i64: 16, 1>}, {transform_indices = @transform_4, window_bounds = array<i64: 16, 16>}, {transform_indices = @transform_5, window_bounds = array<i64: 16, 1>}, {pipeline_mode = #tpu.pipeline_mode<synchronous>, transform_indices = @transform_6, window_bounds = array<i64: 1, 128>}]} {
    %c0_i32 = arith.constant 0 : i32
    %0 = arith.cmpi eq, %arg0, %c0_i32 : i32
    %1 = arith.extui %0 : i1 to i32
    %c0_i32_0 = arith.constant 0 : i32
    %2 = arith.cmpi ne, %1, %c0_i32_0 : i32
    scf.if %2 {
      %cst_44 = arith.constant 0.000000e+00 : f32
      %101 = vector.broadcast %cst_44 : f32 to vector<1x128xf32>
      %c0_45 = arith.constant 0 : index
      %c0_46 = arith.constant 0 : index
      %102 = vector.load %arg8[%c0_45, %c0_46] : memref<1x128xf32, #tpu.memory_space<vmem>>, vector<1x128xf32>
      tpu.vector_store %arg8[%c0_45, %c0_46], %101 {strides = array<i32>} : memref<1x128xf32, #tpu.memory_space<vmem>>, vector<1x128xf32>,
      %cst_47 = arith.constant 0.000000e+00 : f32
      %103 = vector.broadcast %cst_47 : f32 to vector<1x128xf32>
      %c0_48 = arith.constant 0 : index
      %c0_49 = arith.constant 0 : index
      %104 = vector.load %arg9[%c0_48, %c0_49] : memref<1x128xf32, #tpu.memory_space<vmem>>, vector<1x128xf32>
      tpu.vector_store %arg9[%c0_48, %c0_49], %103 {strides = array<i32>} : memref<1x128xf32, #tpu.memory_space<vmem>>, vector<1x128xf32>,
    } else {
    }
    %3 = tpu.iota {dimensions = array<i32: 0>} : vector<16x1xi32>
    %c16_i32 = arith.constant 16 : i32
    %4 = arith.muli %arg0, %c16_i32 : i32
    %5 = vector.broadcast %4 : i32 to vector<16x1xi32>
    %6 = arith.addi %5, %3 : vector<16x1xi32>
    %7 = tpu.iota {dimensions = array<i32: 1>} : vector<16x128xi32>
    %c2_i32 = arith.constant 2 : i32
    %c0_i32_1 = arith.constant 0 : i32
    %8 = arith.cmpi eq, %c2_i32, %c0_i32_1 : i32
    %c1_i32 = arith.constant 1 : i32
    %9 = arith.select %8, %c1_i32, %c2_i32 : i32
    %10 = vector.broadcast %9 : i32 to vector<16x1xi32>
    %11 = arith.remsi %6, %10 : vector<16x1xi32>
    %c0_i32_2 = arith.constant 0 : i32
    %12 = vector.broadcast %c0_i32_2 : i32 to vector<16x1xi32>
    %13 = arith.cmpi ne, %11, %12 : vector<16x1xi32>
    %c0_i32_3 = arith.constant 0 : i32
    %14 = vector.broadcast %c0_i32_3 : i32 to vector<16x1xi32>
    %15 = arith.cmpi slt, %11, %14 : vector<16x1xi32>
    %c0_i32_4 = arith.constant 0 : i32
    %16 = arith.cmpi slt, %9, %c0_i32_4 : i32
    %17 = vector.broadcast %16 : i1 to vector<16x1xi1>
    %18 = vector.broadcast %17 : vector<16x1xi1> to vector<16x1xi1>
    %19 = arith.xori %15, %18 : vector<16x1xi1>
    %20 = arith.andi %19, %13 : vector<16x1xi1>
    %21 = vector.broadcast %9 : i32 to vector<16x1xi32>
    %22 = arith.addi %11, %21 : vector<16x1xi32>
    %23 = arith.select %20, %22, %11 : vector<16x1xi1>, vector<16x1xi32>
    %24 = vector.broadcast %23 : vector<16x1xi32> to vector<16x128xi32>
    %25 = arith.cmpi eq, %24, %7 : vector<16x128xi32>
    %cst = arith.constant 1.000000e+00 : f32
    %cst_5 = arith.constant 0.000000e+00 : f32
    %26 = vector.broadcast %cst : f32 to vector<16x128xf32>
    %27 = vector.broadcast %cst_5 : f32 to vector<16x128xf32>
    %28 = arith.select %25, %26, %27 : vector<16x128xi1>, vector<16x128xf32>
    %c0 = arith.constant 0 : index
    %c0_6 = arith.constant 0 : index
    %29 = vector.load %arg1[%c0, %c0_6] : memref<16x32xf32, #tpu.memory_space<vmem>>, vector<16x32xf32>
    %c0_7 = arith.constant 0 : index
    %c0_8 = arith.constant 0 : index
    %30 = vector.load %arg2[%c0_7, %c0_8] : memref<16x1xi32, #tpu.memory_space<vmem>>, vector<16x1xi32>
    %cst_9 = arith.constant dense<0> : vector<16x1xi32>
    %31 = arith.cmpi ne, %30, %cst_9 : vector<16x1xi32>
    %cst_10 = arith.constant 0.000000e+00 : f32
    %32 = vector.shape_cast %31 : vector<16x1xi1> to vector<16x1xi1>
    %33 = vector.broadcast %32 : vector<16x1xi1> to vector<16x32xi1>
    %34 = vector.broadcast %cst_10 : f32 to vector<16x32xf32>
    %35 = arith.select %33, %29, %34 : vector<16x32xi1>, vector<16x32xf32>
    %cst_11 = arith.constant 1.000000e-07 : f32
    %36 = vector.broadcast %cst_11 : f32 to vector<16x32xf32>
    %37 = arith.addf %35, %36 : vector<16x32xf32>
    %38 = math.log %37 : vector<16x32xf32>
    %39 = arith.mulf %29, %38 : vector<16x32xf32>
    %cst_12 = arith.constant 0.000000e+00 : f32
    %40 = vector.broadcast %cst_12 : f32 to vector<16x32xf32>
    %41 = arith.subf %40, %39 : vector<16x32xf32>
    %cst_13 = arith.constant dense<0.000000e+00> : vector<16xf32>
    %42 = vector.multi_reduction <add>, %41, %cst_13 [1] : vector<16x32xf32> to vector<16xf32>
    %43 = vector.shape_cast %42 : vector<16xf32> to vector<16x1xf32>
    %44 = arith.extui %31 : vector<16x1xi1> to vector<16x1xi32>
    %45 = arith.sitofp %44 : vector<16x1xi32> to vector<16x1xf32>
    %c0_14 = arith.constant 0 : index
    %c0_15 = arith.constant 0 : index
    %46 = vector.load %arg3[%c0_14, %c0_15] : memref<16x48xf32, #tpu.memory_space<vmem>>, vector<16x48xf32>
    %c0_16 = arith.constant 0 : index
    %c0_17 = arith.constant 0 : index
    %47 = vector.load %arg4[%c0_16, %c0_17] : memref<16x1xi32, #tpu.memory_space<vmem>>, vector<16x1xi32>
    %cst_18 = arith.constant dense<0> : vector<16x1xi32>
    %48 = arith.cmpi ne, %47, %cst_18 : vector<16x1xi32>
    %cst_19 = arith.constant 0.000000e+00 : f32
    %49 = vector.shape_cast %48 : vector<16x1xi1> to vector<16x1xi1>
    %50 = vector.broadcast %49 : vector<16x1xi1> to vector<16x48xi1>
    %51 = vector.broadcast %cst_19 : f32 to vector<16x48xf32>
    %52 = arith.select %50, %46, %51 : vector<16x48xi1>, vector<16x48xf32>
    %cst_20 = arith.constant 1.000000e-07 : f32
    %53 = vector.broadcast %cst_20 : f32 to vector<16x48xf32>
    %54 = arith.addf %52, %53 : vector<16x48xf32>
    %55 = math.log %54 : vector<16x48xf32>
    %56 = arith.mulf %46, %55 : vector<16x48xf32>
    %cst_21 = arith.constant 0.000000e+00 : f32
    %57 = vector.broadcast %cst_21 : f32 to vector<16x48xf32>
    %58 = arith.subf %57, %56 : vector<16x48xf32>
    %cst_22 = arith.constant dense<0.000000e+00> : vector<16xf32>
    %59 = vector.multi_reduction <add>, %58, %cst_22 [1] : vector<16x48xf32> to vector<16xf32>
    %60 = vector.shape_cast %59 : vector<16xf32> to vector<16x1xf32>
    %61 = arith.extui %48 : vector<16x1xi1> to vector<16x1xi32>
    %62 = arith.sitofp %61 : vector<16x1xi32> to vector<16x1xf32>
    %c0_23 = arith.constant 0 : index
    %c0_24 = arith.constant 0 : index
    %63 = vector.load %arg5[%c0_23, %c0_24] : memref<16x16xf32, #tpu.memory_space<vmem>>, vector<16x16xf32>
    %c0_25 = arith.constant 0 : index
    %c0_26 = arith.constant 0 : index
    %64 = vector.load %arg6[%c0_25, %c0_26] : memref<16x1xi32, #tpu.memory_space<vmem>>, vector<16x1xi32>
    %cst_27 = arith.constant dense<0> : vector<16x1xi32>
    %65 = arith.cmpi ne, %64, %cst_27 : vector<16x1xi32>
    %cst_28 = arith.constant 0.000000e+00 : f32
    %66 = vector.shape_cast %65 : vector<16x1xi1> to vector<16x1xi1>
    %67 = vector.broadcast %66 : vector<16x1xi1> to vector<16x16xi1>
    %68 = vector.broadcast %cst_28 : f32 to vector<16x16xf32>
    %69 = arith.select %67, %63, %68 : vector<16x16xi1>, vector<16x16xf32>
    %cst_29 = arith.constant 1.000000e-07 : f32
    %70 = vector.broadcast %cst_29 : f32 to vector<16x16xf32>
    %71 = arith.addf %69, %70 : vector<16x16xf32>
    %72 = math.log %71 : vector<16x16xf32>
    %73 = arith.mulf %63, %72 : vector<16x16xf32>
    %cst_30 = arith.constant 0.000000e+00 : f32
    %74 = vector.broadcast %cst_30 : f32 to vector<16x16xf32>
    %75 = arith.subf %74, %73 : vector<16x16xf32>
    %cst_31 = arith.constant dense<0.000000e+00> : vector<16xf32>
    %76 = vector.multi_reduction <add>, %75, %cst_31 [1] : vector<16x16xf32> to vector<16xf32>
    %77 = vector.shape_cast %76 : vector<16xf32> to vector<16x1xf32>
    %78 = arith.extui %65 : vector<16x1xi1> to vector<16x1xi32>
    %79 = arith.sitofp %78 : vector<16x1xi32> to vector<16x1xf32>
    %80 = arith.addf %43, %60 : vector<16x1xf32>
    %81 = arith.addf %80, %77 : vector<16x1xf32>
    %82 = arith.addf %45, %62 : vector<16x1xf32>
    %83 = arith.addf %82, %79 : vector<16x1xf32>
    %c0_32 = arith.constant 0 : index
    %c0_33 = arith.constant 0 : index
    %84 = vector.load %arg8[%c0_32, %c0_33] : memref<1x128xf32, #tpu.memory_space<vmem>>, vector<1x128xf32>
    %85 = vector.broadcast %81 : vector<16x1xf32> to vector<16x128xf32>
    %86 = arith.mulf %85, %28 : vector<16x128xf32>
    %cst_34 = arith.constant dense<0.000000e+00> : vector<128xf32>
    %87 = vector.multi_reduction <add>, %86, %cst_34 [0] : vector<16x128xf32> to vector<128xf32>
    %88 = vector.shape_cast %87 : vector<128xf32> to vector<1x128xf32>
    %89 = arith.addf %84, %88 : vector<1x128xf32>
    %c0_35 = arith.constant 0 : index
    %c0_36 = arith.constant 0 : index
    %90 = vector.load %arg8[%c0_35, %c0_36] : memref<1x128xf32, #tpu.memory_space<vmem>>, vector<1x128xf32>
    tpu.vector_store %arg8[%c0_35, %c0_36], %89 {strides = array<i32>} : memref<1x128xf32, #tpu.memory_space<vmem>>, vector<1x128xf32>,
    %c0_37 = arith.constant 0 : index
    %c0_38 = arith.constant 0 : index
    %91 = vector.load %arg9[%c0_37, %c0_38] : memref<1x128xf32, #tpu.memory_space<vmem>>, vector<1x128xf32>
    %92 = vector.broadcast %83 : vector<16x1xf32> to vector<16x128xf32>
    %93 = arith.mulf %92, %28 : vector<16x128xf32>
    %cst_39 = arith.constant dense<0.000000e+00> : vector<128xf32>
    %94 = vector.multi_reduction <add>, %93, %cst_39 [0] : vector<16x128xf32> to vector<128xf32>
    %95 = vector.shape_cast %94 : vector<128xf32> to vector<1x128xf32>
    %96 = arith.addf %91, %95 : vector<1x128xf32>
    %c0_40 = arith.constant 0 : index
    %c0_41 = arith.constant 0 : index
    %97 = vector.load %arg9[%c0_40, %c0_41] : memref<1x128xf32, #tpu.memory_space<vmem>>, vector<1x128xf32>
    tpu.vector_store %arg9[%c0_40, %c0_41], %96 {strides = array<i32>} : memref<1x128xf32, #tpu.memory_space<vmem>>, vector<1x128xf32>,
    %c0_i32_42 = arith.constant 0 : i32
    %98 = arith.cmpi eq, %arg0, %c0_i32_42 : i32
    %99 = arith.extui %98 : i1 to i32
    %c0_i32_43 = arith.constant 0 : i32
    %100 = arith.cmpi ne, %99, %c0_i32_43 : i32
    scf.if %100 {
      %101 = tpu.iota {dimensions = array<i32: 1>} : vector<1x128xi32>
      %c2_i32_44 = arith.constant 2 : i32
      %102 = vector.broadcast %c2_i32_44 : i32 to vector<1x128xi32>
      %103 = arith.cmpi sge, %101, %102 : vector<1x128xi32>
      %cst_45 = arith.constant 1.000000e+00 : f32
      %cst_46 = arith.constant 0.000000e+00 : f32
      %104 = vector.broadcast %cst_45 : f32 to vector<1x128xf32>
      %105 = vector.broadcast %cst_46 : f32 to vector<1x128xf32>
      %106 = arith.select %103, %104, %105 : vector<1x128xi1>, vector<1x128xf32>
      %c0_47 = arith.constant 0 : index
      %c0_48 = arith.constant 0 : index
      %107 = vector.load %arg8[%c0_47, %c0_48] : memref<1x128xf32, #tpu.memory_space<vmem>>, vector<1x128xf32>
      %c0_49 = arith.constant 0 : index
      %c0_50 = arith.constant 0 : index
      %108 = vector.load %arg9[%c0_49, %c0_50] : memref<1x128xf32, #tpu.memory_space<vmem>>, vector<1x128xf32>
      %109 = arith.addf %108, %106 : vector<1x128xf32>
      %110 = arith.divf %107, %109 : vector<1x128xf32>
      %cst_51 = arith.constant dense<0.000000e+00> : vector<1xf32>
      %111 = vector.multi_reduction <add>, %110, %cst_51 [1] : vector<1x128xf32> to vector<1xf32>
      %112 = vector.shape_cast %111 : vector<1xf32> to vector<1x1xf32>
      %cst_52 = arith.constant 5.000000e-01 : f32
      %113 = vector.broadcast %cst_52 : f32 to vector<1x1xf32>
      %114 = arith.mulf %112, %113 : vector<1x1xf32>
      %115 = vector.shape_cast %114 : vector<1x1xf32> to vector<1x1xf32>
      %116 = vector.broadcast %115 : vector<1x1xf32> to vector<1x128xf32>
      %c0_53 = arith.constant 0 : index
      %c0_54 = arith.constant 0 : index
      %117 = vector.load %arg7[%c0_53, %c0_54] : memref<1x128xf32, #tpu.memory_space<vmem>>, vector<1x128xf32>
      tpu.vector_store %arg7[%c0_53, %c0_54], %116 {strides = array<i32>} : memref<1x128xf32, #tpu.memory_space<vmem>>, vector<1x128xf32>,
    } else {
    }
    return
  }
  func.func @transform_0(%arg0: i32) -> (i32, i32) {
    %c0_i32 = arith.constant 0 : i32
    %c0_i32_0 = arith.constant 0 : i32
    return %arg0, %c0_i32 : i32, i32
  }
  func.func @transform_1(%arg0: i32) -> (i32, i32) {
    %c0_i32 = arith.constant 0 : i32
    %c0_i32_0 = arith.constant 0 : i32
    return %arg0, %c0_i32 : i32, i32
  }
  func.func @transform_2(%arg0: i32) -> (i32, i32) {
    %c0_i32 = arith.constant 0 : i32
    %c0_i32_0 = arith.constant 0 : i32
    return %arg0, %c0_i32 : i32, i32
  }
  func.func @transform_3(%arg0: i32) -> (i32, i32) {
    %c0_i32 = arith.constant 0 : i32
    %c0_i32_0 = arith.constant 0 : i32
    return %arg0, %c0_i32 : i32, i32
  }
  func.func @transform_4(%arg0: i32) -> (i32, i32) {
    %c0_i32 = arith.constant 0 : i32
    %c0_i32_0 = arith.constant 0 : i32
    return %arg0, %c0_i32 : i32, i32
  }
  func.func @transform_5(%arg0: i32) -> (i32, i32) {
    %c0_i32 = arith.constant 0 : i32
    %c0_i32_0 = arith.constant 0 : i32
    return %arg0, %c0_i32 : i32, i32
  }
  func.func @transform_6(%arg0: i32) -> (i32, i32) {
    %c0_i32 = arith.constant 0 : i32
    %c0_i32_0 = arith.constant 0 : i32
    %c0_i32_1 = arith.constant 0 : i32
    return %c0_i32, %c0_i32_0 : i32, i32
  }
}

</mosaic_0001>

<llo_original>
// kernel: entropy_loss.1
$region0: #{entropy_loss.1}
  #allocation0 [shape = 'u32[]', space=smem, size = 0x4, offset = 0x4, fixed_abs, tag = 'smem constant byte address 0x4 - core index']
  #allocation1 [shape = 'u32[144,128]{1,0:T(1,128)}', space=vmem, size = 0x12000, scoped, tag = 'internal scratch']
  #allocation2 [shape = 'f32[1,128]{1,0:T(1,128)}', space=vmem, size = 0x200, scoped, tag = 'scratch operand']
  #allocation3 [shape = 'f32[1,128]{1,0:T(1,128)}', space=vmem, size = 0x200, scoped, tag = 'scratch operand']
  %s0 = inlined_call_operand.vmem [shape: f32[16,32], index: 0, kind: input, shape index: {}]
  %s1 = inlined_call_operand.vmem [shape: s32[16,1], index: 1, kind: input, shape index: {}]
  %s2 = inlined_call_operand.vmem [shape: f32[16,48], index: 2, kind: input, shape index: {}]
  %s3 = inlined_call_operand.vmem [shape: s32[16,1], index: 3, kind: input, shape index: {}]
  %s4 = inlined_call_operand.vmem [shape: f32[16,16], index: 4, kind: input, shape index: {}]
  %s5 = inlined_call_operand.vmem [shape: s32[16,1], index: 5, kind: input, shape index: {}]
  %s6 = inlined_call_operand.hbm [shape: f32[1,128], index: 6, kind: output, shape index: {}]
  %s7 = sld [smem:[#allocation0]]
  $region42: #{entropy_loss.1} parent=0
    _
  %s9 = ssub.s32 1, %s7
  %s10 = scalar_select 0, %s9, %s7
  $region1: #{entropy_loss.1} parent=0
    #allocation4 [shape = 'u8[512]{0}', space=vmem, size = 0x400, scoped, tag = 'output window, operand 0, single buffered']
    #allocation5 [shape = 's32[1]{0}', space=sflag, size = 0x4, scoped, tag = 'scoped memory for entropy_loss.1']
    %11 = vsyncpa [#allocation5], 0
    // Predicated region
    $region2: #{entropy_loss.1} parent=1 // pred_check
      _
    $region3: #{entropy_loss.1} parent=1 // pred_check_branch
      %13 = sbr.rel (0) target = $region5
    $region4: #{entropy_loss.1} parent=1 // pred_region
      _
    $region5: #{entropy_loss.1} parent=1 // pred_fallthru
      _
    // Predicated region
    $region6: #{entropy_loss.1} parent=1 // pred_check
      _
    $region7: #{entropy_loss.1} parent=1 // pred_check_branch
      %15 = sbr.rel (0) target = $region9
    $region8: #{entropy_loss.1} parent=1 // pred_region
      _
    $region9: #{entropy_loss.1} parent=1 // pred_fallthru
      _
    // Predicated region
    $region10: #{entropy_loss.1} parent=1 // pred_check
      _
    $region11: #{entropy_loss.1} parent=1 // pred_check_branch
      %17 = sbr.rel (0) target = $region13
    $region12: #{entropy_loss.1} parent=1 // pred_region
      _
    $region13: #{entropy_loss.1} parent=1 // pred_fallthru
      _
    // Predicated region
    $region14: #{entropy_loss.1} parent=1 // pred_check
      _
    $region15: #{entropy_loss.1} parent=1 // pred_check_branch
      %19 = sbr.rel (0) target = $region17
    $region16: #{entropy_loss.1} parent=1 // pred_region
      _
    $region17: #{entropy_loss.1} parent=1 // pred_fallthru
      _
    // Predicated region
    $region18: #{entropy_loss.1} parent=1 // pred_check
      _
    $region19: #{entropy_loss.1} parent=1 // pred_check_branch
      %21 = sbr.rel (0) target = $region21
    $region20: #{entropy_loss.1} parent=1 // pred_region
      _
    $region21: #{entropy_loss.1} parent=1 // pred_fallthru
      _
    // Predicated region
    $region22: #{entropy_loss.1} parent=1 // pred_check
      _
    $region23: #{entropy_loss.1} parent=1 // pred_check_branch
      %23 = sbr.rel (0) target = $region25
    $region24: #{entropy_loss.1} parent=1 // pred_region
      _
    $region25: #{entropy_loss.1} parent=1 // pred_fallthru
      _
    %p24 = scmp.eq.s32.totalorder 0, 0
    // Predicated region
    $region26: #{entropy_loss.1} parent=1 // pred_check
      %p25 = pneg %p24
    $region27: #{entropy_loss.1} parent=1 // pred_check_branch
      %27 = sbr.rel (%p25) target = $region29
    $region28: #{entropy_loss.1} parent=1 // pred_region
      %28 = vst [vmem:[#allocation2] sm:$0x1] 0.0
      %29 = vst [vmem:[#allocation3] sm:$0x1] 0.0
    $region29: #{entropy_loss.1} parent=1 // pred_fallthru
      _
    %v30 = vlaneseq
    %v31 = vshrl.u32 %v30, 7
    %v32 = vadd.s32 %v31, 8
    %s33 = smul.u32 0, 16
    %v34 = vstv %s33
    %v35 = vadd.s32 %v34, %v31
    %v36 = vadd.s32 %v34, %v32
    %v37 = vlaneseq
    %v38 = vand.u32 %v37, 127
    %vm39 = vcmp.lt.s32.totalorder %v35, 0
    %v40 = vsub.s32 0, %v35
    %v41 = vsel %vm39, %v40, %v35
    %v42 = vshrl.u32 %v41, 1
    %v43 = vand.u32 %v41, 1
    %v44 = vsub.s32 0, %v43
    %v45 = vsel %vm39, %v44, %v43
    %vm46 = vcmp.lt.s32.totalorder %v36, 0
    %v47 = vsub.s32 0, %v36
    %v48 = vsel %vm46, %v47, %v36
    %v49 = vshrl.u32 %v48, 1
    %v50 = vand.u32 %v48, 1
    %v51 = vsub.s32 0, %v50
    %v52 = vsel %vm46, %v51, %v50
    %vm53 = vcmp.ne.s32.totalorder %v45, 0
    %vm54 = vcmp.ne.s32.totalorder %v52, 0
    %vm55 = vcmp.lt.s32.totalorder %v45, 0
    %vm56 = vcmp.lt.s32.totalorder %v52, 0
    %vm57 = vmand %vm55, %vm53
    %vm58 = vmand %vm56, %vm54
    %v59 = vadd.s32 %v45, 2
    %v60 = vadd.s32 %v52, 2
    %v61 = vsel %vm57, %v59, %v45
    %v62 = vsel %vm58, %v60, %v52
    %vm63 = vcmp.eq.s32.totalorder %v61, %v38
    %vm64 = vcmp.eq.s32.totalorder %v62, %v38
    %v65 = vsel %vm63, 1.0, 0.0
    %v66 = vsel %vm64, 1.0, 0.0
    %v67 = vld [vmem:[%s0] sm:$0xff]
    %v68 = vld [vmem:[%s0 + $0x8] sm:$0xff]
    %v69 = vld [vmem:[%s1] sm:$0xff]
    %v70 = vld [vmem:[%s1 + $0x8] sm:$0xff]
    %vm71 = vcmp.ne.s32.totalorder %v69, 0
    %vm72 = vcmp.ne.s32.totalorder %v70, 0
    %v73 = vsel %vm71, 1, 0
    %v74 = vsel %vm72, 1, 0
    %75 = vset.pattern.permute.xlu0 0
    %76 = vperm.xlu0 %75, %v73
    %v77 = vpop.permute.xlu0 %76
    %78 = vset.pattern.permute.xlu0 0
    %79 = vperm.xlu0 %78, %v74
    %v80 = vpop.permute.xlu0 %79
    %vm81 = vcmp.eq.s32.totalorder %v77, 1
    %vm82 = vcmp.eq.s32.totalorder %v80, 1
    %v83 = vsel %vm81, %v67, 0.0
    %v84 = vsel %vm82, %v68, 0.0
    %v85 = vadd.f32 %v83, 1e-07
    %v86 = vadd.f32 %v84, 1e-07
    %v87 = vlog2.pop %v85
    %v88 = vmul.f32 %v87, 0.6931472
    %v89 = vlog2.pop %v86
    %v90 = vmul.f32 %v89, 0.6931472
    %v91 = vmul.f32 %v67, %v88
    %v92 = vmul.f32 %v68, %v90
    %v93 = vsub.f32 0.0, %v91
    %v94 = vsub.f32 0.0, %v92
    %vm95 = vcmask 261120
    %v96 = vsel %vm95, %v93, 0.0
    %97 = vadd.xlane.f32.xlu0 %v96
    %v98 = vpop.xlane.xlu0 %97
    %v99 = vsel %vm95, %v94, 0.0
    %100 = vadd.xlane.f32.xlu0 %v99
    %v101 = vpop.xlane.xlu0 %100
    %v102 = vcvt.s32.f32 %v73
    %v103 = vcvt.s32.f32 %v74
    %v104 = vld [vmem:[%s2] sm:$0xff]
    %v105 = vld [vmem:[%s2 + $0x8] sm:$0xff]
    %v106 = vld [vmem:[%s3] sm:$0xff]
    %v107 = vld [vmem:[%s3 + $0x8] sm:$0xff]
    %vm108 = vcmp.ne.s32.totalorder %v106, 0
    %vm109 = vcmp.ne.s32.totalorder %v107, 0
    %v110 = vsel %vm108, 1, 0
    %v111 = vsel %vm109, 1, 0
    %112 = vset.pattern.permute.xlu0 0
    %113 = vperm.xlu0 %112, %v110
    %v114 = vpop.permute.xlu0 %113
    %115 = vset.pattern.permute.xlu0 0
    %116 = vperm.xlu0 %115, %v111
    %v117 = vpop.permute.xlu0 %116
    %vm118 = vcmp.eq.s32.totalorder %v114, 1
    %vm119 = vcmp.eq.s32.totalorder %v117, 1
    %v120 = vsel %vm118, %v104, 0.0
    %v121 = vsel %vm119, %v105, 0.0
    %v122 = vadd.f32 %v120, 1e-07
    %v123 = vadd.f32 %v121, 1e-07
    %v124 = vlog2.pop %v122
    %v125 = vmul.f32 %v124, 0.6931472
    %v126 = vlog2.pop %v123
    %v127 = vmul.f32 %v126, 0.6931472
    %v128 = vmul.f32 %v104, %v125
    %v129 = vmul.f32 %v105, %v127
    %v130 = vsub.f32 0.0, %v128
    %v131 = vsub.f32 0.0, %v129
    %vm132 = vcmask 392192
    %v133 = vsel %vm132, %v130, 0.0
    %134 = vadd.xlane.f32.xlu0 %v133
    %v135 = vpop.xlane.xlu0 %134
    %v136 = vsel %vm132, %v131, 0.0
    %137 = vadd.xlane.f32.xlu0 %v136
    %v138 = vpop.xlane.xlu0 %137
    %v139 = vcvt.s32.f32 %v110
    %v140 = vcvt.s32.f32 %v111
    %v141 = vld [vmem:[%s4] sm:$0xff]
    %v142 = vld [vmem:[%s4 + $0x8] sm:$0xff]
    %v143 = vld [vmem:[%s5] sm:$0xff]
    %v144 = vld [vmem:[%s5 + $0x8] sm:$0xff]
    %vm145 = vcmp.ne.s32.totalorder %v143, 0
    %vm146 = vcmp.ne.s32.totalorder %v144, 0
    %v147 = vsel %vm145, 1, 0
    %v148 = vsel %vm146, 1, 0
    %149 = vset.pattern.permute.xlu0 0
    %150 = vperm.xlu0 %149, %v147
    %v151 = vpop.permute.xlu0 %150
    %152 = vset.pattern.permute.xlu0 0
    %153 = vperm.xlu0 %152, %v148
    %v154 = vpop.permute.xlu0 %153
    %vm155 = vcmp.eq.s32.totalorder %v151, 1
    %vm156 = vcmp.eq.s32.totalorder %v154, 1
    %v157 = vsel %vm155, %v141, 0.0
    %v158 = vsel %vm156, %v142, 0.0
    %v159 = vadd.f32 %v157, 1e-07
    %v160 = vadd.f32 %v158, 1e-07
    %v161 = vlog2.pop %v159
    %v162 = vmul.f32 %v161, 0.6931472
    %v163 = vlog2.pop %v160
    %v164 = vmul.f32 %v163, 0.6931472
    %v165 = vmul.f32 %v141, %v162
    %v166 = vmul.f32 %v142, %v164
    %v167 = vsub.f32 0.0, %v165
    %v168 = vsub.f32 0.0, %v166
    %vm169 = vcmask 130048
    %v170 = vsel %vm169, %v167, 0.0
    %171 = vadd.xlane.f32.xlu0 %v170
    %v172 = vpop.xlane.xlu0 %171
    %v173 = vsel %vm169, %v168, 0.0
    %174 = vadd.xlane.f32.xlu0 %v173
    %v175 = vpop.xlane.xlu0 %174
    %v176 = vcvt.s32.f32 %v147
    %v177 = vcvt.s32.f32 %v148
    %v178 = vadd.f32 %v98, %v135
    %v179 = vadd.f32 %v101, %v138
    %v180 = vadd.f32 %v178, %v172
    %v181 = vadd.f32 %v179, %v175
    %v182 = vadd.f32 %v102, %v139
    %v183 = vadd.f32 %v103, %v140
    %v184 = vadd.f32 %v182, %v176
    %v185 = vadd.f32 %v183, %v177
    %v186 = vld [vmem:[#allocation2] sm:$0x1]
    %v187 = vmul.f32 %v180, %v65
    %v188 = vmul.f32 %v181, %v66
    %v189 = vadd.f32 %v187, %v188
    %v190 = vrot.slane %v189, 4
    %v191 = vadd.f32 %v189, %v190
    %v192 = vrot.slane %v191, 2
    %v193 = vadd.f32 %v191, %v192
    %v194 = vrot.slane %v193, 1
    %v195 = vadd.f32 %v193, %v194
    %v196 = vadd.f32 %v186, %v195
    %197 = vst [vmem:[#allocation2] sm:$0x1] %v196
    %v198 = vld [vmem:[#allocation3] sm:$0x1]
    %200 = vset.pattern.permute.xlu0 0
    %201 = vperm.xlu0 %200, %v184
    %v202 = vpop.permute.xlu0 %201
    %205 = vset.pattern.permute.xlu0 0
    %206 = vperm.xlu0 %205, %v185
    %v207 = vpop.permute.xlu0 %206
    %v209 = vmul.f32 %v202, %v65
    %v210 = vmul.f32 %v207, %v66
    %v211 = vadd.f32 %v209, %v210
    %v212 = vrot.slane %v211, 4
    %v213 = vadd.f32 %v211, %v212
    %v214 = vrot.slane %v213, 2
    %v215 = vadd.f32 %v213, %v214
    %v216 = vrot.slane %v215, 1
    %v217 = vadd.f32 %v215, %v216
    %v218 = vadd.f32 %v198, %v217
    %219 = vst [vmem:[#allocation3] sm:$0x1] %v218
    // Predicated region
    $region30: #{entropy_loss.1} parent=1 // pred_check
      %p220 = pneg %p24
    $region31: #{entropy_loss.1} parent=1 // pred_check_branch
      %222 = sbr.rel (%p220) target = $region33
    $region32: #{entropy_loss.1} parent=1 // pred_region
      %vm223 = vcmp.ge.s32.totalorder %v38, 2
      %v224 = vsel %vm223, 1.0, 0.0
      %v225 = vld [vmem:[#allocation2] sm:$0x1]
      %v226 = vld [vmem:[#allocation3] sm:$0x1]
      %v227 = vadd.f32 %v226, %v224
      %v228 = vrcp.pop %v227
      %v229 = vmul.f32 %v225, %v228
      %vm230 = vcmask 1040384
      %v231 = vsel %vm230, %v229, 0.0
      %232 = vadd.xlane.f32.xlu0 %v231
      %v233 = vpop.xlane.xlu0 %232
      %v234 = vmul.f32 %v233, 0.5
      %235 = vst [vmem:[#allocation4] sm:$0x1] %v234
    $region33: #{entropy_loss.1} parent=1 // pred_fallthru
      _
    // Predicated region
    $region34: #{entropy_loss.1} parent=1 // pred_check
      _
    $region35: #{entropy_loss.1} parent=1 // pred_check_branch
      %237 = sbr.rel (0) target = $region37
    $region36: #{entropy_loss.1} parent=1 // pred_region
      %s239 = ssub.s32 16, 16
      %240 = vsyncadd [#allocation5], %s239
      %s242 = sshll.u32 [#allocation4], 4
      %s243 = int_to_ptr.vmem [resolvable:$true] %s242
      %245 = dma.vmem_to_hbm [thread:$0]  %s243, 16, %s6, [#allocation5]
    $region37: #{entropy_loss.1} parent=1 // pred_fallthru
      _
    // Predicated region
    $region38: #{entropy_loss.1} parent=1 // pred_check
      _
    $region39: #{entropy_loss.1} parent=1 // pred_check_branch
      %247 = sbr.rel (0) target = $region41
    $region40: #{entropy_loss.1} parent=1 // pred_region
      %248 = dma.done [#allocation5], 16
    $region41: #{entropy_loss.1} parent=1 // pred_fallthru
      _
    %249 = vsyncpa [#allocation5], 1

</llo_original>
